<compile_context>
chip_gen: v5e
topology: v5e:2x2
jax: 0.10.0
libtpu: 0.0.40
codegen_flags: <defaults>
</compile_context>

<pallas_src>
import functools

import jax
import jax.numpy as jnp
from jax.experimental import pallas as pl
from jax.experimental.pallas import tpu as pltpu


def _round_up(x, m):
    return ((x + m - 1) // m) * m


def _vmem_cap_bytes():
    """Physical VMEM per core, conservative fallback (assume v7x: 64 MiB)."""
    try:
        info = pltpu.get_tpu_info()
        for name in ("vmem_capacity_bytes", "vmem_size_bytes", "vmem_bytes"):
            v = getattr(info, name, None)
            if v:
                return int(v)
    except Exception:
        pass
    return 64 * 1024 * 1024


# --------------------------------------------------------------- kernels ----

def _inv_sigma_kernel(w_ref, u_ref, scale_ref, u_new_ref):
    """One power iteration; emits 1/sigma (broadcast over a lane-dense row).

    w_ref     : (D_pad, C_pad) f32  == weight_orig.T (zero-padded)
    u_ref     : (1, C_pad)     f32  == weight_u.T    (zero-padded)
    scale_ref : (1, C_pad)     f32  <- 1/sigma in every lane
    u_new_ref : (1, C_pad)     f32  <- updated weight_u.T (torch buffer update)
    """
    eps = 1e-12
    w = w_ref[...]
    u0 = u_ref[...]
    # v = l2_norm(weight_orig.T @ u)                       -> (D_pad, 1)
    t = jnp.sum(w * u0, axis=1, keepdims=True)
    v = t / jnp.maximum(jnp.sqrt(jnp.sum(t * t)), eps)
    # u_new = l2_norm(weight_orig @ v)                     -> (1, C_pad)
    u1 = jnp.sum(w * v, axis=0, keepdims=True)
    u1n = u1 / jnp.maximum(jnp.sqrt(jnp.sum(u1 * u1)), eps)
    # sigma = u_new . (weight_orig @ v)
    sigma = jnp.sum(u1n * u1)
    # exact reciprocal (NOT pl.reciprocal(approx=True)) to stay within tolerance
    scale_ref[...] = jnp.ones_like(u0) * (1.0 / sigma)
    u_new_ref[...] = u1n


def _conv_bias_lrelu_kernel(patches_ref, w_ref, scale_ref, b_ref, o_ref):
    """(TM,D_pad)bf16 @ (D_pad,C_pad)bf16 -> *1/sigma -> +bias -> LeakyReLU(0.2) -> bf16."""
    acc = jnp.dot(patches_ref[...], w_ref[...],
                  preferred_element_type=jnp.float32)      # MXU, f32 accumulate
    acc = acc * scale_ref[...] + b_ref[...]                # spectral-norm scale fused here
    o_ref[...] = jnp.where(acc >= 0, acc, 0.2 * acc).astype(o_ref.dtype)


# --------------------------------------------------------------- wrapper ----

def dconv_forward(x_nchw, w_oihw, bias, weight_u, *, ksize=5, stride=2, tile_m=1024):
    N, Cin, H, W = x_nchw.shape
    Cout = w_oihw.shape[0]
    K, S = ksize, stride
    P = (K - 1) // 2
    Ho = (H + 2 * P - K) // S + 1
    Wo = (W + 2 * P - K) // S + 1
    M = N * Ho * Wo
    D = K * K * Cin

    # Lane-dense output (Cout -> 128k), aligned contraction (D -> 128k), M tiled.
    D_pad = _round_up(D, 128)
    C_pad = _round_up(Cout, 128)
    # TODO(synk): on v6e/v7x pad C (and the K feeds) to 256 once a layer becomes
    # compute-bound (256-wide MXU); at the current mem-bound sizes 128 is fine.
    TM = _round_up(min(tile_m, _round_up(M, 16)), 16)      # bf16 sublane packing
    M_pad = _round_up(M, TM)
    grid_m = M_pad // TM

    # ---- glue: NCHW -> NHWC (bf16), pad, im2col patches, column order (kh,kw,cin) ----
    # bf16 from the start so every XLA intermediate (pad/stack/reshape) and the
    # materialized patch buffer move half the bytes.
    # TODO(synk): fully fusing im2col into the kernel (manual strided DMA of the
    # padded NHWC input + a (kh,kw) reduction axis) would remove this HBM buffer
    # entirely (~1.5-2.5x end to end); deferred to keep the kernel robust.
    x_nhwc = jnp.transpose(x_nchw, (0, 2, 3, 1)).astype(jnp.bfloat16)
    x_sp = jnp.pad(x_nhwc, ((0, 0), (P, P), (P, P), (0, 0)))
    pieces = [x_sp[:, kh:kh + Ho * S:S, kw:kw + Wo * S:S, :]
              for kh in range(K) for kw in range(K)]              # (N,Ho,Wo,Cin) each
    patches = jnp.stack(pieces, axis=-2).reshape(M, D)
    patches = jnp.pad(patches, ((0, M_pad - M), (0, D_pad - D)))

    # weight (Cout,Cin,KH,KW) -> (KH,KW,Cin,Cout) -> (D,Cout), zero-padded
    w_mat = jnp.transpose(w_oihw, (2, 3, 1, 0)).reshape(D, Cout).astype(jnp.float32)
    w_mat = jnp.pad(w_mat, ((0, D_pad - D), (0, C_pad - Cout)))
    w_bf16 = w_mat.astype(jnp.bfloat16)                           # UNnormalized weight
    b2d = jnp.pad(bias.reshape(1, Cout).astype(jnp.float32),
                  ((0, 0), (0, C_pad - Cout)))
    u2d = jnp.pad(weight_u.reshape(1, Cout).astype(jnp.float32),
                  ((0, 0), (0, C_pad - Cout)))

    vmem_cap = _vmem_cap_bytes()
    vmem_ceiling = int(vmem_cap * 3 // 4)      # ~48 MiB on v7x, ~96 MiB on v5e/v6e

    # ---- spectral norm: tiny kernel -> 1/sigma only (no normalized-weight rewrite) ----
    # TODO(synk): for very large Cin*K^2 x Cout layers tile this reduction; here it
    # is a single (D_pad, C_pad) block with an explicit vmem_limit.
    sig_vmem = int(min(max(6 * D_pad * C_pad * 4, 8 << 20), vmem_ceiling))
    scale_row, u_new = pl.pallas_call(
        _inv_sigma_kernel,
        out_shape=(jax.ShapeDtypeStruct((1, C_pad), jnp.float32),
                   jax.ShapeDtypeStruct((1, C_pad), jnp.float32)),
        grid=(1,),
        in_specs=[
            pl.BlockSpec((D_pad, C_pad), lambda i: (0, 0)),
            pl.BlockSpec((1, C_pad), lambda i: (0, 0)),
        ],
        out_specs=[
            pl.BlockSpec((1, C_pad), lambda i: (0, 0)),
            pl.BlockSpec((1, C_pad), lambda i: (0, 0)),
        ],
        compiler_params=pltpu.CompilerParams(
            dimension_semantics=("arbitrary",),
            vmem_limit_bytes=sig_vmem),
    )(w_mat, u2d)
    # TODO(synk): PyTorch writes u_new back into the `weight_u` buffer (and divides
    # the weight in place) every training forward; expose u_new if that side
    # effect is needed.  Eval mode in torch skips the power iteration entirely.
    del u_new

    # ---- hot path: tiled, double-buffered im2col matmul + 1/sigma + bias + LeakyReLU ----
    vmem_need = (2 * TM * D_pad * 2          # patches double-buffer (bf16)
                 + 2 * TM * C_pad * 2        # output double-buffer (bf16)
                 + 2 * D_pad * C_pad * 2     # resident weight (bf16)
                 + 4 * C_pad * 4)            # 1/sigma + bias rows (f32)
    vmem_limit = int(min(max(4 * vmem_need, 8 << 20), vmem_ceiling))

    # TODO(synk): on v7x verify both TensorCores pick up the M axis; if one TC is
    # idle switch to pltpu.CORE_PARALLEL.  On v5e sweep pipeline_mode=pl.Buffered(3)
    # on the patches spec (and Buffered(1) on the constant weight/bias specs for
    # large-Cin layers on v7x).
    out_flat = pl.pallas_call(
        _conv_bias_lrelu_kernel,
        out_shape=jax.ShapeDtypeStruct((M_pad, C_pad), jnp.bfloat16),
        grid=(grid_m,),
        in_specs=[
            pl.BlockSpec((TM, D_pad), lambda i: (i, 0)),      # streamed M tiles
            pl.BlockSpec((D_pad, C_pad), lambda i: (0, 0)),   # resident weight
            pl.BlockSpec((1, C_pad), lambda i: (0, 0)),       # resident 1/sigma row
            pl.BlockSpec((1, C_pad), lambda i: (0, 0)),       # resident bias row
        ],
        out_specs=pl.BlockSpec((TM, C_pad), lambda i: (i, 0)),
        compiler_params=pltpu.CompilerParams(
            dimension_semantics=("parallel",),                # megacore sharding
            vmem_limit_bytes=vmem_limit),
    )(patches, w_bf16, scale_row, b2d)

    # ---- epilogue: crop padding, back to NCHW f32 (reshape is free; the crop +
    # transpose + f32 cast is one fused XLA copy over the true-sized bf16 output).
    # TODO(synk): keep NHWC / fuse this transpose into the consumer when DConv
    # feeds another fused op instead of returning to the framework.
    out = out_flat[:M, :Cout].reshape(N, Ho, Wo, Cout)
    return jnp.transpose(out, (0, 3, 1, 2)).astype(jnp.float32)


# ------------------------------------------------------------- reference ----

def _reference(x_nchw, w_oihw, bias, weight_u, *, ksize=5, stride=2):
    """Pure-JAX f32 reference matching the PyTorch semantics."""
    eps = 1e-12
    Cout = w_oihw.shape[0]
    P = (ksize - 1) // 2
    wo = w_oihw.reshape(Cout, -1)                      # torch .flatten(1)
    u = weight_u.reshape(Cout, 1)
    v = wo.T @ u
    v = v / jnp.maximum(jnp.linalg.norm(v), eps)
    u1 = wo @ v
    u1n = u1 / jnp.maximum(jnp.linalg.norm(u1), eps)
    sigma = (u1n.T @ wo @ v)[0, 0]
    w_sn = w_oihw / sigma
    y = jax.lax.conv_general_dilated(
        x_nchw, w_sn, window_strides=(stride, stride),
        padding=((P, P), (P, P)),
        dimension_numbers=("NCHW", "OIHW", "NCHW"))
    y = y + bias.reshape(1, Cout, 1, 1)
    return jnp.where(y >= 0, y, 0.2 * y)


if __name__ == "__main__":
    N, Cin, Cout, H, W = 2, 4, 8, 16, 16
    K, S = 5, 2

    key = jax.random.PRNGKey(0)
    kx, kw, kb, ku = jax.random.split(key, 4)
    x = jax.random.normal(kx, (N, Cin, H, W), dtype=jnp.float32)
    fan_in = Cin * K * K
    bound = 1.0 / (fan_in ** 0.5)
    w = jax.random.uniform(kw, (Cout, Cin, K, K), jnp.float32, -bound, bound)
    b = jax.random.uniform(kb, (Cout,), jnp.float32, -bound, bound)
    u = jax.random.normal(ku, (Cout, 1), dtype=jnp.float32)  # stand-in for trunc_normal_

    # tile_m=64 -> M=128 gives a 2-step grid, exercising the tiled/pipelined path.
    fwd = jax.jit(functools.partial(dconv_forward, ksize=K, stride=S, tile_m=64))
    out = jax.block_until_ready(fwd(x, w, b, u))

    ref = _reference(x, w, b, u, ksize=K, stride=S)
    assert out.shape == (N, Cout, 8, 8), out.shape
    max_err = float(jnp.max(jnp.abs(out - ref)))
    # bf16 matmul feeds / bf16 output (f32 accumulate) -> relaxed tolerance vs f32 ref
    assert jnp.allclose(out, ref, rtol=5e-2, atol=5e-2), max_err

    print("KERNEL_OK")
</pallas_src>

<mosaic_0001>
module attributes {stable_mosaic.version = 11 : i64} {
  func.func @_inv_sigma_kernel(%arg0: i32, %arg1: memref<128x128xf32, #tpu.memory_space<vmem>>, %arg2: memref<1x128xf32, #tpu.memory_space<vmem>>, %arg3: memref<1x128xf32, #tpu.memory_space<vmem>>, %arg4: memref<1x128xf32, #tpu.memory_space<vmem>>) attributes {dimension_semantics = [#tpu.dimension_semantics<arbitrary>], iteration_bounds = array<i64: 1>, scalar_prefetch = 0 : i64, scratch_operands = 0 : i64, tpu.core_type = #tpu.core_type<tc>, window_params = [{pipeline_mode = #tpu.pipeline_mode<synchronous>, transform_indices = @transform_0, window_bounds = array<i64: 128, 128>}, {pipeline_mode = #tpu.pipeline_mode<synchronous>, transform_indices = @transform_1, window_bounds = array<i64: 1, 128>}, {pipeline_mode = #tpu.pipeline_mode<synchronous>, transform_indices = @transform_2, window_bounds = array<i64: 1, 128>}, {pipeline_mode = #tpu.pipeline_mode<synchronous>, transform_indices = @transform_3, window_bounds = array<i64: 1, 128>}]} {
    %c0 = arith.constant 0 : index
    %c0_0 = arith.constant 0 : index
    %0 = vector.load %arg1[%c0, %c0_0] : memref<128x128xf32, #tpu.memory_space<vmem>>, vector<128x128xf32>
    %c0_1 = arith.constant 0 : index
    %c0_2 = arith.constant 0 : index
    %1 = vector.load %arg2[%c0_1, %c0_2] : memref<1x128xf32, #tpu.memory_space<vmem>>, vector<1x128xf32>
    %2 = vector.broadcast %1 : vector<1x128xf32> to vector<128x128xf32>
    %3 = arith.mulf %0, %2 : vector<128x128xf32>
    %cst = arith.constant dense<0.000000e+00> : vector<128xf32>
    %4 = vector.multi_reduction <add>, %3, %cst [1] : vector<128x128xf32> to vector<128xf32>
    %5 = vector.shape_cast %4 : vector<128xf32> to vector<128x1xf32>
    %6 = arith.mulf %5, %5 : vector<128x1xf32>
    %7 = vector.shape_cast %6 : vector<128x1xf32> to vector<1x128x1xf32>
    %cst_3 = arith.constant dense<0.000000e+00> : vector<1xf32>
    %8 = vector.multi_reduction <add>, %7, %cst_3 [1, 2] : vector<1x128x1xf32> to vector<1xf32>
    %9 = vector.shape_cast %8 : vector<1xf32> to vector<1x1x1xf32>
    %10 = vector.extract %9[0, 0, 0] : f32 from vector<1x1x1xf32>
    %11 = math.sqrt %10 : f32
    %cst_4 = arith.constant 9.99999996E-13 : f32
    %12 = arith.maximumf %11, %cst_4 : f32
    %13 = vector.broadcast %12 : f32 to vector<128x1xf32>
    %14 = arith.divf %5, %13 : vector<128x1xf32>
    %15 = vector.broadcast %14 : vector<128x1xf32> to vector<128x128xf32>
    %16 = arith.mulf %0, %15 : vector<128x128xf32>
    %cst_5 = arith.constant dense<0.000000e+00> : vector<128xf32>
    %17 = vector.multi_reduction <add>, %16, %cst_5 [0] : vector<128x128xf32> to vector<128xf32>
    %18 = vector.shape_cast %17 : vector<128xf32> to vector<1x128xf32>
    %19 = arith.mulf %18, %18 : vector<1x128xf32>
    %20 = vector.shape_cast %19 : vector<1x128xf32> to vector<1x1x128xf32>
    %cst_6 = arith.constant dense<0.000000e+00> : vector<1xf32>
    %21 = vector.multi_reduction <add>, %20, %cst_6 [1, 2] : vector<1x1x128xf32> to vector<1xf32>
    %22 = vector.shape_cast %21 : vector<1xf32> to vector<1x1x1xf32>
    %23 = vector.extract %22[0, 0, 0] : f32 from vector<1x1x1xf32>
    %24 = math.sqrt %23 : f32
    %cst_7 = arith.constant 9.99999996E-13 : f32
    %25 = arith.maximumf %24, %cst_7 : f32
    %26 = vector.broadcast %25 : f32 to vector<1x128xf32>
    %27 = arith.divf %18, %26 : vector<1x128xf32>
    %28 = arith.mulf %27, %18 : vector<1x128xf32>
    %29 = vector.shape_cast %28 : vector<1x128xf32> to vector<1x1x128xf32>
    %cst_8 = arith.constant dense<0.000000e+00> : vector<1xf32>
    %30 = vector.multi_reduction <add>, %29, %cst_8 [1, 2] : vector<1x1x128xf32> to vector<1xf32>
    %31 = vector.shape_cast %30 : vector<1xf32> to vector<1x1x1xf32>
    %32 = vector.extract %31[0, 0, 0] : f32 from vector<1x1x1xf32>
    %cst_9 = arith.constant 1.000000e+00 : f32
    %33 = vector.broadcast %cst_9 : f32 to vector<1x128xf32>
    %cst_10 = arith.constant 1.000000e+00 : f32
    %34 = arith.divf %cst_10, %32 : f32
    %35 = vector.broadcast %34 : f32 to vector<1x128xf32>
    %36 = arith.mulf %33, %35 : vector<1x128xf32>
    %c0_11 = arith.constant 0 : index
    %c0_12 = arith.constant 0 : index
    %37 = vector.load %arg3[%c0_11, %c0_12] : memref<1x128xf32, #tpu.memory_space<vmem>>, vector<1x128xf32>
    tpu.vector_store %arg3[%c0_11, %c0_12], %36 {strides = array<i32>} : memref<1x128xf32, #tpu.memory_space<vmem>>, vector<1x128xf32>,
    %c0_13 = arith.constant 0 : index
    %c0_14 = arith.constant 0 : index
    %38 = vector.load %arg4[%c0_13, %c0_14] : memref<1x128xf32, #tpu.memory_space<vmem>>, vector<1x128xf32>
    tpu.vector_store %arg4[%c0_13, %c0_14], %27 {strides = array<i32>} : memref<1x128xf32, #tpu.memory_space<vmem>>, vector<1x128xf32>,
    return
  }
  func.func @transform_0(%arg0: i32) -> (i32, i32) {
    %c0_i32 = arith.constant 0 : i32
    %c0_i32_0 = arith.constant 0 : i32
    %c0_i32_1 = arith.constant 0 : i32
    return %c0_i32, %c0_i32_0 : i32, i32
  }
  func.func @transform_1(%arg0: i32) -> (i32, i32) {
    %c0_i32 = arith.constant 0 : i32
    %c0_i32_0 = arith.constant 0 : i32
    %c0_i32_1 = arith.constant 0 : i32
    return %c0_i32, %c0_i32_0 : i32, i32
  }
  func.func @transform_2(%arg0: i32) -> (i32, i32) {
    %c0_i32 = arith.constant 0 : i32
    %c0_i32_0 = arith.constant 0 : i32
    %c0_i32_1 = arith.constant 0 : i32
    return %c0_i32, %c0_i32_0 : i32, i32
  }
  func.func @transform_3(%arg0: i32) -> (i32, i32) {
    %c0_i32 = arith.constant 0 : i32
    %c0_i32_0 = arith.constant 0 : i32
    %c0_i32_1 = arith.constant 0 : i32
    return %c0_i32, %c0_i32_0 : i32, i32
  }
}

module attributes {stable_mosaic.version = 11 : i64} {
  func.func @_conv_bias_lrelu_kernel(%arg0: i32, %arg1: memref<64x128xbf16, #tpu.memory_space<vmem>>, %arg2: memref<128x128xbf16, #tpu.memory_space<vmem>>, %arg3: memref<1x128xf32, #tpu.memory_space<vmem>>, %arg4: memref<1x128xf32, #tpu.memory_space<vmem>>, %arg5: memref<64x128xbf16, #tpu.memory_space<vmem>>) attributes {dimension_semantics = [#tpu.dimension_semantics<parallel>], iteration_bounds = array<i64: 2>, scalar_prefetch = 0 : i64, scratch_operands = 0 : i64, tpu.core_type = #tpu.core_type<tc>, window_params = [{transform_indices = @transform_0, window_bounds = array<i64: 64, 128>}, {pipeline_mode = #tpu.pipeline_mode<synchronous>, transform_indices = @transform_1, window_bounds = array<i64: 128, 128>}, {pipeline_mode = #tpu.pipeline_mode<synchronous>, transform_indices = @transform_2, window_bounds = array<i64: 1, 128>}, {pipeline_mode = #tpu.pipeline_mode<synchronous>, transform_indices = @transform_3, window_bounds = array<i64: 1, 128>}, {transform_indices = @transform_4, window_bounds = array<i64: 64, 128>}]} {
    %c0 = arith.constant 0 : index
    %c0_0 = arith.constant 0 : index
    %0 = vector.load %arg1[%c0, %c0_0] : memref<64x128xbf16, #tpu.memory_space<vmem>>, vector<64x128xbf16>
    %c0_1 = arith.constant 0 : index
    %c0_2 = arith.constant 0 : index
    %1 = vector.load %arg2[%c0_1, %c0_2] : memref<128x128xbf16, #tpu.memory_space<vmem>>, vector<128x128xbf16>
    %cst = arith.constant dense<0.000000e+00> : vector<64x128xf32>
    %2 = tpu.matmul %0, %1, %cst {dimension_numbers = #tpu.dot_dimension_numbers<[1], [0], [0], [1], [0, 0, 1, 1], [], []>} : vector<64x128xbf16>, vector<128x128xbf16>, vector<64x128xf32> -> vector<64x128xf32>
    %c0_3 = arith.constant 0 : index
    %c0_4 = arith.constant 0 : index
    %3 = vector.load %arg3[%c0_3, %c0_4] : memref<1x128xf32, #tpu.memory_space<vmem>>, vector<1x128xf32>
    %4 = vector.broadcast %3 : vector<1x128xf32> to vector<64x128xf32>
    %5 = arith.mulf %2, %4 : vector<64x128xf32>
    %c0_5 = arith.constant 0 : index
    %c0_6 = arith.constant 0 : index
    %6 = vector.load %arg4[%c0_5, %c0_6] : memref<1x128xf32, #tpu.memory_space<vmem>>, vector<1x128xf32>
    %7 = vector.broadcast %6 : vector<1x128xf32> to vector<64x128xf32>
    %8 = arith.addf %5, %7 : vector<64x128xf32>
    %cst_7 = arith.constant 0.000000e+00 : f32
    %9 = vector.broadcast %cst_7 : f32 to vector<64x128xf32>
    %10 = arith.cmpf oge, %8, %9 : vector<64x128xf32>
    %cst_8 = arith.constant 2.000000e-01 : f32
    %11 = vector.broadcast %cst_8 : f32 to vector<64x128xf32>
    %12 = arith.mulf %11, %8 : vector<64x128xf32>
    %13 = arith.select %10, %8, %12 : vector<64x128xi1>, vector<64x128xf32>
    %14 = arith.truncf %13 : vector<64x128xf32> to vector<64x128xbf16>
    %c0_9 = arith.constant 0 : index
    %c0_10 = arith.constant 0 : index
    %15 = vector.load %arg5[%c0_9, %c0_10] : memref<64x128xbf16, #tpu.memory_space<vmem>>, vector<64x128xbf16>
    tpu.vector_store %arg5[%c0_9, %c0_10], %14 {strides = array<i32>} : memref<64x128xbf16, #tpu.memory_space<vmem>>, vector<64x128xbf16>,
    return
  }
  func.func @transform_0(%arg0: i32) -> (i32, i32) {
    %c0_i32 = arith.constant 0 : i32
    %c0_i32_0 = arith.constant 0 : i32
    return %arg0, %c0_i32 : i32, i32
  }
  func.func @transform_1(%arg0: i32) -> (i32, i32) {
    %c0_i32 = arith.constant 0 : i32
    %c0_i32_0 = arith.constant 0 : i32
    %c0_i32_1 = arith.constant 0 : i32
    return %c0_i32, %c0_i32_0 : i32, i32
  }
  func.func @transform_2(%arg0: i32) -> (i32, i32) {
    %c0_i32 = arith.constant 0 : i32
    %c0_i32_0 = arith.constant 0 : i32
    %c0_i32_1 = arith.constant 0 : i32
    return %c0_i32, %c0_i32_0 : i32, i32
  }
  func.func @transform_3(%arg0: i32) -> (i32, i32) {
    %c0_i32 = arith.constant 0 : i32
    %c0_i32_0 = arith.constant 0 : i32
    %c0_i32_1 = arith.constant 0 : i32
    return %c0_i32, %c0_i32_0 : i32, i32
  }
  func.func @transform_4(%arg0: i32) -> (i32, i32) {
    %c0_i32 = arith.constant 0 : i32
    %c0_i32_0 = arith.constant 0 : i32
    return %arg0, %c0_i32 : i32, i32
  }
}

</mosaic_0001>

<llo_original>
// kernel: dconv_forward.2
$region0: #{dconv_forward.2}
  #allocation0 [shape = 'u32[]', space=smem, size = 0x4, offset = 0x4, fixed_abs, tag = 'smem constant byte address 0x4 - core index']
  #allocation1 [shape = 'u32[72,128]{1,0:T(1,128)}', space=vmem, size = 0x9000, scoped, tag = 'internal scratch']
  %s0 = inlined_call_operand.vmem [shape: f32[128,128], index: 0, kind: input, shape index: {}]
  %s1 = inlined_call_operand.vmem [shape: f32[1,128], index: 1, kind: input, shape index: {}]
  %s2 = inlined_call_operand.vmem [shape: f32[1,128], index: 2, kind: output, shape index: {0}]
  %s3 = inlined_call_operand.hbm [shape: f32[1,128], index: 3, kind: output, shape index: {1}]
  %4 = xla_tuple %s2, %s3
  %s5 = sld [smem:[#allocation0]]
  $region26: #{dconv_forward.2} parent=0
    _
  %s7 = ssub.s32 1, %s5
  %s8 = scalar_select 0, %s7, %s5
  $region1: #{dconv_forward.2} parent=0
    #allocation2 [shape = 'u8[512]{0}', space=vmem, size = 0x400, scoped, tag = 'output window, operand 1, single buffered']
    #allocation3 [shape = 's32[1]{0}', space=sflag, size = 0x4, scoped, tag = 'scoped memory for dconv_forward.2']
    %9 = vsyncpa [#allocation3], 0
    // Predicated region
    $region2: #{dconv_forward.2} parent=1 // pred_check
      _
    $region3: #{dconv_forward.2} parent=1 // pred_check_branch
      %11 = sbr.rel (0) target = $region5
    $region4: #{dconv_forward.2} parent=1 // pred_region
      _
    $region5: #{dconv_forward.2} parent=1 // pred_fallthru
      _
    // Predicated region
    $region6: #{dconv_forward.2} parent=1 // pred_check
      _
    $region7: #{dconv_forward.2} parent=1 // pred_check_branch
      %13 = sbr.rel (0) target = $region9
    $region8: #{dconv_forward.2} parent=1 // pred_region
      _
    $region9: #{dconv_forward.2} parent=1 // pred_fallthru
      _
    %v14 = vld [vmem:[%s0] sm:$0xff]
    %v15 = vld [vmem:[%s0 + $0x8] sm:$0xff]
    %v16 = vld [vmem:[%s0 + $0x10] sm:$0xff]
    %v17 = vld [vmem:[%s0 + $0x18] sm:$0xff]
    %v18 = vld [vmem:[%s0 + $0x20] sm:$0xff]
    %v19 = vld [vmem:[%s0 + $0x28] sm:$0xff]
    %v20 = vld [vmem:[%s0 + $0x30] sm:$0xff]
    %v21 = vld [vmem:[%s0 + $0x38] sm:$0xff]
    %v22 = vld [vmem:[%s0 + $0x40] sm:$0xff]
    %v23 = vld [vmem:[%s0 + $0x48] sm:$0xff]
    %v24 = vld [vmem:[%s0 + $0x50] sm:$0xff]
    %v25 = vld [vmem:[%s0 + $0x58] sm:$0xff]
    %v26 = vld [vmem:[%s0 + $0x60] sm:$0xff]
    %v27 = vld [vmem:[%s0 + $0x68] sm:$0xff]
    %v28 = vld [vmem:[%s0 + $0x70] sm:$0xff]
    %v29 = vld [vmem:[%s0 + $0x78] sm:$0xff]
    %v30 = vld [vmem:[%s1] sm:$0x1]
    %v32 = vperm.slane %v30, 0
    %v34 = vmul.f32 %v14, %v32
    %v35 = vmul.f32 %v15, %v32
    %v36 = vmul.f32 %v16, %v32
    %v37 = vmul.f32 %v17, %v32
    %v38 = vmul.f32 %v18, %v32
    %v39 = vmul.f32 %v19, %v32
    %v40 = vmul.f32 %v20, %v32
    %v41 = vmul.f32 %v21, %v32
    %v42 = vmul.f32 %v22, %v32
    %v43 = vmul.f32 %v23, %v32
    %v44 = vmul.f32 %v24, %v32
    %v45 = vmul.f32 %v25, %v32
    %v46 = vmul.f32 %v26, %v32
    %v47 = vmul.f32 %v27, %v32
    %v48 = vmul.f32 %v28, %v32
    %v49 = vmul.f32 %v29, %v32
    %50 = vadd.xlane.f32.xlu0 %v34
    %v51 = vpop.xlane.xlu0 %50
    %52 = vadd.xlane.f32.xlu0 %v35
    %v53 = vpop.xlane.xlu0 %52
    %54 = vadd.xlane.f32.xlu0 %v36
    %v55 = vpop.xlane.xlu0 %54
    %56 = vadd.xlane.f32.xlu0 %v37
    %v57 = vpop.xlane.xlu0 %56
    %58 = vadd.xlane.f32.xlu0 %v38
    %v59 = vpop.xlane.xlu0 %58
    %60 = vadd.xlane.f32.xlu0 %v39
    %v61 = vpop.xlane.xlu0 %60
    %62 = vadd.xlane.f32.xlu0 %v40
    %v63 = vpop.xlane.xlu0 %62
    %64 = vadd.xlane.f32.xlu0 %v41
    %v65 = vpop.xlane.xlu0 %64
    %66 = vadd.xlane.f32.xlu0 %v42
    %v67 = vpop.xlane.xlu0 %66
    %68 = vadd.xlane.f32.xlu0 %v43
    %v69 = vpop.xlane.xlu0 %68
    %70 = vadd.xlane.f32.xlu0 %v44
    %v71 = vpop.xlane.xlu0 %70
    %72 = vadd.xlane.f32.xlu0 %v45
    %v73 = vpop.xlane.xlu0 %72
    %74 = vadd.xlane.f32.xlu0 %v46
    %v75 = vpop.xlane.xlu0 %74
    %76 = vadd.xlane.f32.xlu0 %v47
    %v77 = vpop.xlane.xlu0 %76
    %78 = vadd.xlane.f32.xlu0 %v48
    %v79 = vpop.xlane.xlu0 %78
    %80 = vadd.xlane.f32.xlu0 %v49
    %v81 = vpop.xlane.xlu0 %80
    %v82 = vmul.f32 %v51, %v51
    %v83 = vmul.f32 %v53, %v53
    %v84 = vmul.f32 %v55, %v55
    %v85 = vmul.f32 %v57, %v57
    %v86 = vmul.f32 %v59, %v59
    %v87 = vmul.f32 %v61, %v61
    %v88 = vmul.f32 %v63, %v63
    %v89 = vmul.f32 %v65, %v65
    %v90 = vmul.f32 %v67, %v67
    %v91 = vmul.f32 %v69, %v69
    %v92 = vmul.f32 %v71, %v71
    %v93 = vmul.f32 %v73, %v73
    %v94 = vmul.f32 %v75, %v75
    %v95 = vmul.f32 %v77, %v77
    %v96 = vmul.f32 %v79, %v79
    %v97 = vmul.f32 %v81, %v81
    %vm98 = vcmask 7168
    %v99 = vsel %vm98, %v82, 0.0
    %v100 = vsel %vm98, %v83, 0.0
    %v101 = vadd.f32 %v99, %v100
    %v102 = vsel %vm98, %v84, 0.0
    %v103 = vadd.f32 %v101, %v102
    %v104 = vsel %vm98, %v85, 0.0
    %v105 = vadd.f32 %v103, %v104
    %v106 = vsel %vm98, %v86, 0.0
    %v107 = vadd.f32 %v105, %v106
    %v108 = vsel %vm98, %v87, 0.0
    %v109 = vadd.f32 %v107, %v108
    %v110 = vsel %vm98, %v88, 0.0
    %v111 = vadd.f32 %v109, %v110
    %v112 = vsel %vm98, %v89, 0.0
    %v113 = vadd.f32 %v111, %v112
    %v114 = vsel %vm98, %v90, 0.0
    %v115 = vadd.f32 %v113, %v114
    %v116 = vsel %vm98, %v91, 0.0
    %v117 = vadd.f32 %v115, %v116
    %v118 = vsel %vm98, %v92, 0.0
    %v119 = vadd.f32 %v117, %v118
    %v120 = vsel %vm98, %v93, 0.0
    %v121 = vadd.f32 %v119, %v120
    %v122 = vsel %vm98, %v94, 0.0
    %v123 = vadd.f32 %v121, %v122
    %v124 = vsel %vm98, %v95, 0.0
    %v125 = vadd.f32 %v123, %v124
    %v126 = vsel %vm98, %v96, 0.0
    %v127 = vadd.f32 %v125, %v126
    %v128 = vsel %vm98, %v97, 0.0
    %v129 = vadd.f32 %v127, %v128
    %130 = vadd.xlane.f32.xlu0 %v129
    %v131 = vpop.xlane.xlu0 %130
    %v132 = vrot.slane %v131, 4
    %v133 = vadd.f32 %v131, %v132
    %v134 = vrot.slane %v133, 2
    %v135 = vadd.f32 %v133, %v134
    %v136 = vrot.slane %v135, 1
    %v137 = vadd.f32 %v135, %v136
    %s138 = vtos %v137
    %v139 = vstv %s138
    %v140 = vrsqrt.pop %v139
    %v141 = vmul.f32 %v140, %v139
    %v142 = vmul.f32 %v141, %v140
    %v143 = vmul.f32 0.5, %v142
    %v144 = vsub.f32 1.5, %v143
    %v145 = vmul.f32 %v140, %v144
    %v146 = vmul.f32 %v139, %v145
    %vm147 = vcmp.eq.f32.partialorder %v139, inf
    %v148 = vsel %vm147, %v139, %v146
    %vm149 = vcmp.eq.f32.partialorder %v139, 0.0
    %v150 = vand.u32 %v139, 2147483648
    %v151 = vsel %vm149, %v150, %v148
    %s152 = vtos %v151
    %s153 = smax.f32 %s152, 1e-12
    %v154 = vstv %s153
    %v155 = vrcp.pop %v154
    %v156 = vmul.f32 %v154, %v155
    %v157 = vsub.f32 1.0, %v156
    %v158 = vmul.f32 %v155, %v157
    %v159 = vadd.f32 %v155, %v158
    %vm160 = vweird.f32 %v154
    %vm161 = vweird.f32 %v155
    %vm162 = vmor %vm160, %vm161
    %v163 = vsel %vm162, %v155, %v159
    %v164 = vand.u32 2147483647, %v154
    %vm165 = vcmp.eq.f32.partialorder %v164, 8.507059e+37
    %v166 = vand.u32 %v154, 2147483648
    %v167 = vor.u32 1.1754944e-38, %v166
    %v168 = vsel %vm165, %v167, %v163
    %v169 = vmul.f32 %v51, %v168
    %v170 = vmul.f32 %v53, %v168
    %v171 = vmul.f32 %v55, %v168
    %v172 = vmul.f32 %v57, %v168
    %v173 = vmul.f32 %v59, %v168
    %v174 = vmul.f32 %v61, %v168
    %v175 = vmul.f32 %v63, %v168
    %v176 = vmul.f32 %v65, %v168
    %v177 = vmul.f32 %v67, %v168
    %v178 = vmul.f32 %v69, %v168
    %v179 = vmul.f32 %v71, %v168
    %v180 = vmul.f32 %v73, %v168
    %v181 = vmul.f32 %v75, %v168
    %v182 = vmul.f32 %v77, %v168
    %v183 = vmul.f32 %v79, %v168
    %v184 = vmul.f32 %v81, %v168
    %v185 = vmul.f32 %v14, %v169
    %v186 = vmul.f32 %v15, %v170
    %v187 = vmul.f32 %v16, %v171
    %v188 = vmul.f32 %v17, %v172
    %v189 = vmul.f32 %v18, %v173
    %v190 = vmul.f32 %v19, %v174
    %v191 = vmul.f32 %v20, %v175
    %v192 = vmul.f32 %v21, %v176
    %v193 = vmul.f32 %v22, %v177
    %v194 = vmul.f32 %v23, %v178
    %v195 = vmul.f32 %v24, %v179
    %v196 = vmul.f32 %v25, %v180
    %v197 = vmul.f32 %v26, %v181
    %v198 = vmul.f32 %v27, %v182
    %v199 = vmul.f32 %v28, %v183
    %v200 = vmul.f32 %v29, %v184
    %v201 = vadd.f32 %v185, %v186
    %v202 = vadd.f32 %v201, %v187
    %v203 = vadd.f32 %v202, %v188
    %v204 = vadd.f32 %v203, %v189
    %v205 = vadd.f32 %v204, %v190
    %v206 = vadd.f32 %v205, %v191
    %v207 = vadd.f32 %v206, %v192
    %v208 = vadd.f32 %v207, %v193
    %v209 = vadd.f32 %v208, %v194
    %v210 = vadd.f32 %v209, %v195
    %v211 = vadd.f32 %v210, %v196
    %v212 = vadd.f32 %v211, %v197
    %v213 = vadd.f32 %v212, %v198
    %v214 = vadd.f32 %v213, %v199
    %v215 = vadd.f32 %v214, %v200
    %v216 = vrot.slane %v215, 4
    %v217 = vadd.f32 %v215, %v216
    %v218 = vrot.slane %v217, 2
    %v219 = vadd.f32 %v217, %v218
    %v220 = vrot.slane %v219, 1
    %v221 = vadd.f32 %v219, %v220
    %v222 = vmul.f32 %v221, %v221
    %vm223 = vcmask 1040384
    %v224 = vsel %vm223, %v222, 0.0
    %225 = vadd.xlane.f32.xlu0 %v224
    %v226 = vpop.xlane.xlu0 %225
    %v227 = vrot.slane %v226, 4
    %v228 = vadd.f32 %v226, %v227
    %v229 = vrot.slane %v228, 2
    %v230 = vadd.f32 %v228, %v229
    %v231 = vrot.slane %v230, 1
    %v232 = vadd.f32 %v230, %v231
    %s233 = vtos %v232
    %v234 = vstv %s233
    %v235 = vrsqrt.pop %v234
    %v236 = vmul.f32 %v235, %v234
    %v237 = vmul.f32 %v236, %v235
    %v238 = vmul.f32 0.5, %v237
    %v239 = vsub.f32 1.5, %v238
    %v240 = vmul.f32 %v235, %v239
    %v241 = vmul.f32 %v234, %v240
    %vm242 = vcmp.eq.f32.partialorder %v234, inf
    %v243 = vsel %vm242, %v234, %v241
    %vm244 = vcmp.eq.f32.partialorder %v234, 0.0
    %v245 = vand.u32 %v234, 2147483648
    %v246 = vsel %vm244, %v245, %v243
    %s247 = vtos %v246
    %s248 = smax.f32 %s247, 1e-12
    %v249 = vstv %s248
    %v250 = vrcp.pop %v249
    %v251 = vmul.f32 %v249, %v250
    %v252 = vsub.f32 1.0, %v251
    %v253 = vmul.f32 %v250, %v252
    %v254 = vadd.f32 %v250, %v253
    %vm255 = vweird.f32 %v249
    %vm256 = vweird.f32 %v250
    %vm257 = vmor %vm255, %vm256
    %v258 = vsel %vm257, %v250, %v254
    %v259 = vand.u32 2147483647, %v249
    %vm260 = vcmp.eq.f32.partialorder %v259, 8.507059e+37
    %v261 = vand.u32 %v249, 2147483648
    %v262 = vor.u32 1.1754944e-38, %v261
    %v263 = vsel %vm260, %v262, %v258
    %v264 = vmul.f32 %v221, %v263
    %v265 = vmul.f32 %v264, %v221
    %v266 = vsel %vm223, %v265, 0.0
    %267 = vadd.xlane.f32.xlu0 %v266
    %v268 = vpop.xlane.xlu0 %267
    %v269 = vrot.slane %v268, 4
    %v270 = vadd.f32 %v268, %v269
    %v271 = vrot.slane %v270, 2
    %v272 = vadd.f32 %v270, %v271
    %v273 = vrot.slane %v272, 1
    %v274 = vadd.f32 %v272, %v273
    %s275 = vtos %v274
    %v276 = vstv %s275
    %v277 = vrcp.pop %v276
    %v278 = vmul.f32 %v276, %v277
    %v279 = vsub.f32 1.0, %v278
    %v280 = vmul.f32 %v277, %v279
    %v281 = vadd.f32 %v277, %v280
    %vm282 = vweird.f32 %v276
    %vm283 = vweird.f32 %v277
    %vm284 = vmor %vm282, %vm283
    %v285 = vsel %vm284, %v277, %v281
    %v286 = vand.u32 2147483647, %v276
    %vm287 = vcmp.eq.f32.partialorder %v286, 8.507059e+37
    %v288 = vand.u32 %v276, 2147483648
    %v289 = vor.u32 1.1754944e-38, %v288
    %v290 = vsel %vm287, %v289, %v285
    %s291 = vtos %v290
    %v292 = vstv %s291
    %293 = vst [vmem:[%s2] sm:$0x1] %v292
    %294 = vst [vmem:[#allocation2] sm:$0x1] %v264
    // Predicated region
    $region10: #{dconv_forward.2} parent=1 // pred_check
      _
    $region11: #{dconv_forward.2} parent=1 // pred_check_branch
      %296 = sbr.rel (0) target = $region13
    $region12: #{dconv_forward.2} parent=1 // pred_region
      _
    $region13: #{dconv_forward.2} parent=1 // pred_fallthru
      _
    // Predicated region
    $region14: #{dconv_forward.2} parent=1 // pred_check
      _
    $region15: #{dconv_forward.2} parent=1 // pred_check_branch
      %298 = sbr.rel (0) target = $region17
    $region16: #{dconv_forward.2} parent=1 // pred_region
      %300 = vsyncadd [#allocation3], 0
      %s302 = sshll.u32 [#allocation2], 4
      %s303 = int_to_ptr.vmem [resolvable:$true] %s302
      %s304 = sshll.u32 %s3, 4
      %s305 = int_to_ptr.hbm [resolvable:$true] %s304
      %307 = dma.vmem_to_hbm [thread:$0]  %s303, 16, %s305, [#allocation3]
    $region17: #{dconv_forward.2} parent=1 // pred_fallthru
      _
    // Predicated region
    $region18: #{dconv_forward.2} parent=1 // pred_check
      _
    $region19: #{dconv_forward.2} parent=1 // pred_check_branch
      %309 = sbr.rel (0) target = $region21
    $region20: #{dconv_forward.2} parent=1 // pred_region
      _
    $region21: #{dconv_forward.2} parent=1 // pred_fallthru
      _
    // Predicated region
    $region22: #{dconv_forward.2} parent=1 // pred_check
      _
    $region23: #{dconv_forward.2} parent=1 // pred_check_branch
      %311 = sbr.rel (0) target = $region25
    $region24: #{dconv_forward.2} parent=1 // pred_region
      %313 = dma.done [#allocation3], 16
    $region25: #{dconv_forward.2} parent=1 // pred_fallthru
      _
    %314 = vsyncpa [#allocation3], 1

// kernel: dconv_forward.3
$region0: #{dconv_forward.3}
  #allocation0 [shape = 'u32[]', space=smem, size = 0x4, offset = 0x4, fixed_abs, tag = 'smem constant byte address 0x4 - core index']
  #allocation1 [shape = 'u32[72,128]{1,0:T(1,128)}', space=vmem, size = 0x9000, scoped, tag = 'internal scratch']
  %s0 = inlined_call_operand.vmem [shape: bf16[128,128], index: 0, kind: input, shape index: {}]
  %s1 = inlined_call_operand.vmem [shape: bf16[128,128], index: 1, kind: input, shape index: {}]
  %s2 = inlined_call_operand.vmem [shape: f32[1,128], index: 2, kind: input, shape index: {}]
  %s3 = inlined_call_operand.vmem [shape: f32[1,128], index: 3, kind: input, shape index: {}]
  %s4 = inlined_call_operand.vmem [shape: bf16[128,128], index: 4, kind: output, shape index: {}]
  %s5 = sld [smem:[#allocation0]]
  $region49: #{dconv_forward.3} parent=0
    _
  %s7 = ssub.s32 1, %s5
  %s8 = scalar_select 0, %s7, %s5
  loop: start=0, step=1, limit=4
  $region2: #{dconv_forward.3} parent=0 // loop_pre_header
    _
  $region3: #{dconv_forward.3} parent=0 // loop_header
    %s10 = sphi 0, %s14
    %p11 = scmp.ge.s32.totalorder %s10, 4
    %s20 = sphi 0, %s22
    %s23 = sphi 0, %s20
    %s24 = sphi 0, %s23
    %s40 = sphi 0, %s24
    %s44 = sphi 0, %s44
    %s46 = sphi 0, %s44
    %s47 = sphi 0, %s46
    %s61 = sphi 0, %s47
    %s65 = sphi 0, %s65
    %s67 = sphi 0, %s65
    %s68 = sphi 0, %s67
    %s82 = sphi 0, %s68
    %s86 = sphi 0, %s86
    %s88 = sphi 0, %s86
    %s89 = sphi 0, %s88
    %s103 = sphi 0, %s89
    %s109 = sphi 0, %s111
    %s112 = sphi 0, %s109
    %s113 = sphi 0, %s112
    %s129 = sphi 0, %s113
  $region4: #{dconv_forward.3} parent=0 // loop_header_branch
    %13 = sbr.rel (%p11) target = $region8
  $region5: #{dconv_forward.3} parent=0 // loop_body
    %s15 = ssub.s32 %s10, 1
    %s16 = ssub.s32 %s10, 2
    %s17 = sadd.s32 %s10, 1
    %s18 = ssub.s32 %s10, %s17
    %p19 = scmp.eq.s32.totalorder %s18, 0
    %s21 = sadd.s32 %s20, 1
    %s22 = scalar_select %p19, %s20, %s21
    %p25 = pneg %p19
    %p26 = scmp.eq.s32.totalorder %s10, 1
    %p27 = por %p25, %p26
    %p28 = scmp.ne.s32.totalorder %s20, %s23
    %p29 = scmp.eq.s32.totalorder %s10, 0
    %p30 = por %p28, %p29
    %p31 = scmp.ne.s32.totalorder %s20, %s23
    %p32 = scmp.eq.s32.totalorder %s15, 1
    %p33 = por %p31, %p32
    %p34 = scmp.ne.s32.totalorder %s23, %s24
    %p35 = scmp.eq.s32.totalorder %s15, 0
    %p36 = por %p34, %p35
    %p37 = scmp.ne.s32.totalorder %s23, %s24
    %p38 = scmp.eq.s32.totalorder %s16, 1
    %p39 = por %p37, %p38
    %p41 = scmp.ne.s32.totalorder %s24, %s40
    %p42 = scmp.eq.s32.totalorder %s16, 0
    %p43 = por %p41, %p42
    %s45 = sadd.s32 %s44, 1
    %p48 = scmp.eq.s32.totalorder %s10, 1
    %p49 = scmp.ne.s32.totalorder %s44, %s46
    %p50 = scmp.eq.s32.totalorder %s10, 0
    %p51 = por %p49, %p50
    %p52 = scmp.ne.s32.totalorder %s44, %s46
    %p53 = scmp.eq.s32.totalorder %s15, 1
    %p54 = por %p52, %p53
    %p55 = scmp.ne.s32.totalorder %s46, %s47
    %p56 = scmp.eq.s32.totalorder %s15, 0
    %p57 = por %p55, %p56
    %p58 = scmp.ne.s32.totalorder %s46, %s47
    %p59 = scmp.eq.s32.totalorder %s16, 1
    %p60 = por %p58, %p59
    %p62 = scmp.ne.s32.totalorder %s47, %s61
    %p63 = scmp.eq.s32.totalorder %s16, 0
    %p64 = por %p62, %p63
    %s66 = sadd.s32 %s65, 1
    %p69 = scmp.eq.s32.totalorder %s10, 1
    %p70 = scmp.ne.s32.totalorder %s65, %s67
    %p71 = scmp.eq.s32.totalorder %s10, 0
    %p72 = por %p70, %p71
    %p73 = scmp.ne.s32.totalorder %s65, %s67
    %p74 = scmp.eq.s32.totalorder %s15, 1
    %p75 = por %p73, %p74
    %p76 = scmp.ne.s32.totalorder %s67, %s68
    %p77 = scmp.eq.s32.totalorder %s15, 0
    %p78 = por %p76, %p77
    %p79 = scmp.ne.s32.totalorder %s67, %s68
    %p80 = scmp.eq.s32.totalorder %s16, 1
    %p81 = por %p79, %p80
    %p83 = scmp.ne.s32.totalorder %s68, %s82
    %p84 = scmp.eq.s32.totalorder %s16, 0
    %p85 = por %p83, %p84
    %s87 = sadd.s32 %s86, 1
    %p90 = scmp.eq.s32.totalorder %s10, 1
    %p91 = scmp.ne.s32.totalorder %s86, %s88
    %p92 = scmp.eq.s32.totalorder %s10, 0
    %p93 = por %p91, %p92
    %p94 = scmp.ne.s32.totalorder %s86, %s88
    %p95 = scmp.eq.s32.totalorder %s15, 1
    %p96 = por %p94, %p95
    %p97 = scmp.ne.s32.totalorder %s88, %s89
    %p98 = scmp.eq.s32.totalorder %s15, 0
    %p99 = por %p97, %p98
    %p100 = scmp.ne.s32.totalorder %s88, %s89
    %p101 = scmp.eq.s32.totalorder %s16, 1
    %p102 = por %p100, %p101
    %p104 = scmp.ne.s32.totalorder %s89, %s103
    %p105 = scmp.eq.s32.totalorder %s16, 0
    %p106 = por %p104, %p105
    %s107 = ssub.s32 %s10, %s17
    %p108 = scmp.eq.s32.totalorder %s107, 0
    %s110 = sadd.s32 %s109, 1
    %s111 = scalar_select %p108, %s109, %s110
    %p114 = pneg %p108
    %p115 = scmp.eq.s32.totalorder %s10, 1
    %p116 = por %p114, %p115
    %p117 = scmp.ne.s32.totalorder %s109, %s112
    %p118 = scmp.eq.s32.totalorder %s10, 0
    %p119 = por %p117, %p118
    %p120 = scmp.ne.s32.totalorder %s109, %s112
    %p121 = scmp.eq.s32.totalorder %s15, 1
    %p122 = por %p120, %p121
    %p123 = scmp.ne.s32.totalorder %s112, %s113
    %p124 = scmp.eq.s32.totalorder %s15, 0
    %p125 = por %p123, %p124
    %p126 = scmp.ne.s32.totalorder %s112, %s113
    %p127 = scmp.eq.s32.totalorder %s16, 1
    %p128 = por %p126, %p127
    %p130 = scmp.ne.s32.totalorder %s113, %s129
    %p131 = scmp.eq.s32.totalorder %s16, 0
    %p132 = por %p130, %p131
    %p133 = scmp.le.s32.totalorder 1, %s10
    %p134 = scmp.lt.s32.totalorder %s10, 3
    %p135 = pnand %p133, %p134
    %p136 = pneg %p135
    // Predicated region
    $region9: #{dconv_forward.3} parent=5 // pred_check
      _
    $region10: #{dconv_forward.3} parent=5 // pred_check_branch
      %138 = sbr.rel (%p135) target = $region12
    $region11: #{dconv_forward.3} parent=5 // pred_region
      %s139 = ssub.s32 %s10, 1
      // Predicated region
      $region13: #{dconv_forward.3} parent=11 // pred_check
        %p140 = pneg %p57
      $region14: #{dconv_forward.3} parent=11 // pred_check_branch
        %142 = sbr.rel (%p140) target = $region16
      $region15: #{dconv_forward.3} parent=11 // pred_region
        _
      $region16: #{dconv_forward.3} parent=11 // pred_fallthru
        _
      // Predicated region
      $region17: #{dconv_forward.3} parent=11 // pred_check
        %p143 = pneg %p78
      $region18: #{dconv_forward.3} parent=11 // pred_check_branch
        %145 = sbr.rel (%p143) target = $region20
      $region19: #{dconv_forward.3} parent=11 // pred_region
        _
      $region20: #{dconv_forward.3} parent=11 // pred_fallthru
        _
      // Predicated region
      $region21: #{dconv_forward.3} parent=11 // pred_check
        %p146 = pneg %p99
      $region22: #{dconv_forward.3} parent=11 // pred_check_branch
        %148 = sbr.rel (%p146) target = $region24
      $region23: #{dconv_forward.3} parent=11 // pred_region
        _
      $region24: #{dconv_forward.3} parent=11 // pred_fallthru
        _
    $region12: #{dconv_forward.3} parent=5 // pred_fallthru
      _
    %p149 = scmp.lt.s32.totalorder %s10, 2
    // Predicated region
    $region25: #{dconv_forward.3} parent=5 // pred_check
      %p150 = pneg %p149
    $region26: #{dconv_forward.3} parent=5 // pred_check_branch
      %152 = sbr.rel (%p150) target = $region28
    $region27: #{dconv_forward.3} parent=5 // pred_region
      // Predicated region
      $region29: #{dconv_forward.3} parent=27 // pred_check
        %p153 = pneg %p30
      $region30: #{dconv_forward.3} parent=27 // pred_check_branch
        %155 = sbr.rel (%p153) target = $region32
      $region31: #{dconv_forward.3} parent=27 // pred_region
        %s156 = smul.u32 8, %s10
        %p157 = scmp.lt.s32.totalorder %s156, 15
        %s158 = scalar_select %p157, %s156, 15
        %s159 = smul.addr %s158, 4
        %s160 = scalar_lea.vmem %s0, %s159
        %s161 = smul.u32 8, %s10
      $region32: #{dconv_forward.3} parent=27 // pred_fallthru
        _
    $region28: #{dconv_forward.3} parent=5 // pred_fallthru
      _
    %p162 = scmp.le.s32.totalorder 1, %s10
    %p163 = scmp.lt.s32.totalorder %s10, 3
    %p164 = pnand %p162, %p163
    %p165 = pneg %p164
    // Predicated region
    $region33: #{dconv_forward.3} parent=5 // pred_check
      _
    $region34: #{dconv_forward.3} parent=5 // pred_check_branch
      %167 = sbr.rel (%p164) target = $region36
    $region35: #{dconv_forward.3} parent=5 // pred_region
      %s168 = ssub.s32 %s10, 1
      %s169 = smul.u32 8, %s15
      %p170 = scmp.lt.s32.totalorder %s169, 15
      %s171 = scalar_select %p170, %s169, 15
      %s172 = smul.addr %s171, 4
      %s173 = scalar_lea.vmem %s0, %s172
      %p174 = pneg %p36
      %p175 = pneg %p33
      %p176 = pneg %p57
      %p177 = pneg %p54
      %p178 = pneg %p78
      %p179 = pneg %p75
      %p180 = pneg %p99
      %p181 = pneg %p96
      %p182 = pneg %p125
      %p183 = pneg %p122
      %s184 = smul.u32 8, %s15
      %p185 = scmp.lt.s32.totalorder %s184, 15
      %s186 = scalar_select %p185, %s184, 15
      %s187 = smul.addr %s186, 4
      %s188 = scalar_lea.vmem %s4, %s187
      %s189 = smul.u32 8, %s15
      %p190 = scmp.lt.s32.totalorder %s189, 15
      %s191 = scalar_select %p190, %s189, 15
      %s192 = smul.addr %s191, 4
      %s193 = scalar_lea.vmem %s0, %s192
      %s194 = smul.u32 8, %s15
      %s195 = smul.u32 8, %s15
      %p196 = scmp.lt.s32.totalorder %s195, 15
      %s197 = scalar_select %p196, %s195, 15
      %s198 = smul.addr %s197, 4
      %s199 = scalar_lea.vmem %s4, %s198
      %s200 = smul.u32 8, %s15
      %v201 = vld [vmem:[%s193] sm:$0xf]
      %v202 = vld [vmem:[%s193 + $0x4] sm:$0xf]
      %v203 = vld [vmem:[%s193 + $0x8] sm:$0xf]
      %v204 = vld [vmem:[%s193 + $0xc] sm:$0xf]
      %v205 = vld [vmem:[%s193 + $0x10] sm:$0xf]
      %v206 = vld [vmem:[%s193 + $0x14] sm:$0xf]
      %v207 = vld [vmem:[%s193 + $0x18] sm:$0xf]
      %v208 = vld [vmem:[%s193 + $0x1c] sm:$0xf]
      %v209 = vld [vmem:[%s1] sm:$0xf]
      %v210 = vld [vmem:[%s1 + $0x4] sm:$0xf]
      %v211 = vld [vmem:[%s1 + $0x8] sm:$0xf]
      %v212 = vld [vmem:[%s1 + $0xc] sm:$0xf]
      %v213 = vld [vmem:[%s1 + $0x10] sm:$0xf]
      %v214 = vld [vmem:[%s1 + $0x14] sm:$0xf]
      %v215 = vld [vmem:[%s1 + $0x18] sm:$0xf]
      %v216 = vld [vmem:[%s1 + $0x1c] sm:$0xf]
      %v217 = vld [vmem:[%s1 + $0x20] sm:$0xf]
      %v218 = vld [vmem:[%s1 + $0x24] sm:$0xf]
      %v219 = vld [vmem:[%s1 + $0x28] sm:$0xf]
      %v220 = vld [vmem:[%s1 + $0x2c] sm:$0xf]
      %v221 = vld [vmem:[%s1 + $0x30] sm:$0xf]
      %v222 = vld [vmem:[%s1 + $0x34] sm:$0xf]
      %v223 = vld [vmem:[%s1 + $0x38] sm:$0xf]
      %v224 = vld [vmem:[%s1 + $0x3c] sm:$0xf]
      %v233 = vunpack.c.l.b16 %v201
      %v234 = vunpack.c.l.b16 %v202
      %v235 = vunpack.c.l.b16 %v203
      %v236 = vunpack.c.l.b16 %v204
      %v237 = vunpack.c.l.b16 %v205
      %v238 = vunpack.c.l.b16 %v206
      %v239 = vunpack.c.l.b16 %v207
      %v240 = vunpack.c.l.b16 %v208
      %v241 = vpack.c.b16 %v234, %v233
      %v242 = vpack.c.b16 %v236, %v235
      %v243 = vpack.c.b16 %v238, %v237
      %v244 = vpack.c.b16 %v240, %v239
      %v265 = vunpack.c.l.b16 %v209
      %v266 = vunpack.c.l.b16 %v210
      %v267 = vunpack.c.l.b16 %v211
      %v268 = vunpack.c.l.b16 %v212
      %v269 = vunpack.c.l.b16 %v213
      %v270 = vunpack.c.l.b16 %v214
      %v271 = vunpack.c.l.b16 %v215
      %v272 = vunpack.c.l.b16 %v216
      %v273 = vunpack.c.l.b16 %v217
      %v274 = vunpack.c.l.b16 %v218
      %v275 = vunpack.c.l.b16 %v219
      %v276 = vunpack.c.l.b16 %v220
      %v277 = vunpack.c.l.b16 %v221
      %v278 = vunpack.c.l.b16 %v222
      %v279 = vunpack.c.l.b16 %v223
      %v280 = vunpack.c.l.b16 %v224
      %v281 = vpack.c.b16 %v266, %v265
      %v282 = vpack.c.b16 %v268, %v267
      %v283 = vpack.c.b16 %v270, %v269
      %v284 = vpack.c.b16 %v272, %v271
      %v285 = vpack.c.b16 %v274, %v273
      %v286 = vpack.c.b16 %v276, %v275
      %v287 = vpack.c.b16 %v278, %v277
      %v288 = vpack.c.b16 %v280, %v279
      %297 = vmatpush.bf16.msra.mxu0 %v288
      %298 = vmatpush.bf16.msra.mxu0 %v287
      %299 = vmatpush.bf16.msra.mxu0 %v286
      %300 = vmatpush.bf16.msra.mxu0 %v285
      %301 = vmatpush.bf16.msra.mxu0 %v284
      %302 = vmatpush.bf16.msra.mxu0 %v283
      %303 = vmatpush.bf16.msra.mxu0 %v282
      %304 = vmatpush.bf16.msra.mxu0 %v281
      %305 = vmatmul.bf16.gmra.mxu0 %v241
      %v306 = vpop.f32.mrf.mxu0
      %v307 = vadd.f32 0.0, %v306
      %v308 = vpop.f32.mrf.mxu0
      %v309 = vadd.f32 0.0, %v308
      %310 = vmatmul.bf16.gmra.mxu0 %v242
      %v311 = vpop.f32.mrf.mxu0
      %v312 = vadd.f32 0.0, %v311
      %v313 = vpop.f32.mrf.mxu0
      %v314 = vadd.f32 0.0, %v313
      %315 = vmatmul.bf16.gmra.mxu0 %v243
      %v316 = vpop.f32.mrf.mxu0
      %v317 = vadd.f32 0.0, %v316
      %v318 = vpop.f32.mrf.mxu0
      %v319 = vadd.f32 0.0, %v318
      %320 = vmatmul.bf16.gmra.mxu0 %v244
      %v321 = vpop.f32.mrf.mxu0
      %v322 = vadd.f32 0.0, %v321
      %v323 = vpop.f32.mrf.mxu0
      %v324 = vadd.f32 0.0, %v323
      %325 = vdwg.mxu0
      %v326 = vld [vmem:[%s2] sm:$0x1]
      %v328 = vperm.slane %v326, 0
      %v330 = vmul.f32 %v307, %v328
      %v331 = vmul.f32 %v309, %v328
      %v332 = vmul.f32 %v312, %v328
      %v333 = vmul.f32 %v314, %v328
      %v334 = vmul.f32 %v317, %v328
      %v335 = vmul.f32 %v319, %v328
      %v336 = vmul.f32 %v322, %v328
      %v337 = vmul.f32 %v324, %v328
      %v338 = vld [vmem:[%s3] sm:$0x1]
      %v340 = vperm.slane %v338, 0
      %v342 = vadd.f32 %v330, %v340
      %v343 = vadd.f32 %v331, %v340
      %v344 = vadd.f32 %v332, %v340
      %v345 = vadd.f32 %v333, %v340
      %v346 = vadd.f32 %v334, %v340
      %v347 = vadd.f32 %v335, %v340
      %v348 = vadd.f32 %v336, %v340
      %v349 = vadd.f32 %v337, %v340
      %vm350 = vcmp.ge.f32.partialorder %v342, 0.0
      %vm351 = vcmp.ge.f32.partialorder %v343, 0.0
      %vm352 = vcmp.ge.f32.partialorder %v344, 0.0
      %vm353 = vcmp.ge.f32.partialorder %v345, 0.0
      %vm354 = vcmp.ge.f32.partialorder %v346, 0.0
      %vm355 = vcmp.ge.f32.partialorder %v347, 0.0
      %vm356 = vcmp.ge.f32.partialorder %v348, 0.0
      %vm357 = vcmp.ge.f32.partialorder %v349, 0.0
      %v358 = vmul.f32 %v342, 0.2
      %v359 = vmul.f32 %v343, 0.2
      %v360 = vmul.f32 %v344, 0.2
      %v361 = vmul.f32 %v345, 0.2
      %v362 = vmul.f32 %v346, 0.2
      %v363 = vmul.f32 %v347, 0.2
      %v364 = vmul.f32 %v348, 0.2
      %v365 = vmul.f32 %v349, 0.2
      %v366 = vsel %vm350, %v342, %v358
      %v367 = vsel %vm351, %v343, %v359
      %v368 = vsel %vm352, %v344, %v360
      %v369 = vsel %vm353, %v345, %v361
      %v370 = vsel %vm354, %v346, %v362
      %v371 = vsel %vm355, %v347, %v363
      %v372 = vsel %vm356, %v348, %v364
      %v373 = vsel %vm357, %v349, %v365
      %v374 = vpack.c.bf16 %v366, %v366
      %v375 = vpack.c.bf16 %v367, %v367
      %v376 = vpack.c.bf16 %v368, %v368
      %v377 = vpack.c.bf16 %v369, %v369
      %v378 = vpack.c.bf16 %v370, %v370
      %v379 = vpack.c.bf16 %v371, %v371
      %v380 = vpack.c.bf16 %v372, %v372
      %v381 = vpack.c.bf16 %v373, %v373
      %382 = vst [vmem:[%s199] sm:$0xf] %v374
      %383 = vst [vmem:[%s199 + $0x4] sm:$0xf] %v375
      %384 = vst [vmem:[%s199 + $0x8] sm:$0xf] %v376
      %385 = vst [vmem:[%s199 + $0xc] sm:$0xf] %v377
      %386 = vst [vmem:[%s199 + $0x10] sm:$0xf] %v378
      %387 = vst [vmem:[%s199 + $0x14] sm:$0xf] %v379
      %388 = vst [vmem:[%s199 + $0x18] sm:$0xf] %v380
      %389 = vst [vmem:[%s199 + $0x1c] sm:$0xf] %v381
      %s390 = smul.u32 8, %s15
      %p391 = scmp.lt.s32.totalorder %s390, 15
      %s392 = scalar_select %p391, %s390, 15
      %s393 = smul.addr %s392, 4
      %s394 = scalar_lea.vmem %s4, %s393
      // Predicated region
      $region37: #{dconv_forward.3} parent=35 // pred_check
        %p395 = pneg %p122
      $region38: #{dconv_forward.3} parent=35 // pred_check_branch
        %397 = sbr.rel (%p395) target = $region40
      $region39: #{dconv_forward.3} parent=35 // pred_region
        %s398 = smul.u32 8, %s15
      $region40: #{dconv_forward.3} parent=35 // pred_fallthru
        _
    $region36: #{dconv_forward.3} parent=5 // pred_fallthru
      _
    %p399 = scmp.le.s32.totalorder 2, %s10
    // Predicated region
    $region41: #{dconv_forward.3} parent=5 // pred_check
      %p400 = pneg %p399
    $region42: #{dconv_forward.3} parent=5 // pred_check_branch
      %402 = sbr.rel (%p400) target = $region44
    $region43: #{dconv_forward.3} parent=5 // pred_region
      %s403 = ssub.s32 %s10, 2
      // Predicated region
      $region45: #{dconv_forward.3} parent=43 // pred_check
        %p404 = pneg %p128
      $region46: #{dconv_forward.3} parent=43 // pred_check_branch
        %406 = sbr.rel (%p404) target = $region48
      $region47: #{dconv_forward.3} parent=43 // pred_region
        %s407 = smul.u32 8, %s16
        %p408 = scmp.lt.s32.totalorder %s407, 15
        %s409 = scalar_select %p408, %s407, 15
        %s410 = smul.addr %s409, 4
        %s411 = scalar_lea.vmem %s4, %s410
      $region48: #{dconv_forward.3} parent=43 // pred_fallthru
        _
    $region44: #{dconv_forward.3} parent=5 // pred_fallthru
      _
  $region6: #{dconv_forward.3} parent=0 // loop_footer
    %s14 = sadd.s32 1, %s10
  $region7: #{dconv_forward.3} parent=0 // loop_footer_branch
    %9 = sbr.rel target = $region3
  $region8: #{dconv_forward.3} parent=0 // loop_exit
    _

</llo_original>
